<compile_context>
chip_gen: v6e
topology: v6e:2x2x1
jax: 0.10.0
libtpu: 0.0.40
codegen_flags: <defaults>
</compile_context>

<pallas_src>
import functools

import jax
import jax.numpy as jnp
from jax.experimental import pallas as pl
from jax.experimental.pallas import tpu as pltpu


def _round_up(n: int, m: int) -> int:
    return (n + m - 1) // m * m


def _sigmoid(x):
    # Single-EUP-op lowering (tanh) instead of exp + divide.
    return 0.5 * jnp.tanh(0.5 * x) + 0.5


def _mlp_kernel(x_ref, w1_ref, b1_ref, w2_ref, b2_ref, w3_ref, b3_ref, o_ref):
    # Matmul operands in the (possibly reduced) weight dtype, f32 accumulate,
    # bias-add + sigmoid in f32, then immediately narrowed -> short f32 live
    # ranges (important for v7x's 64 MiB VMEM at large batch tiles).
    cdt = w1_ref.dtype
    x = x_ref[...].astype(cdt)

    h1 = _sigmoid(jnp.dot(x, w1_ref[...], preferred_element_type=jnp.float32)
                  + b1_ref[...]).astype(cdt)
    h2 = _sigmoid(jnp.dot(h1, w2_ref[...], preferred_element_type=jnp.float32)
                  + b2_ref[...]).astype(cdt)
    h3 = _sigmoid(jnp.dot(h2, w3_ref[...], preferred_element_type=jnp.float32)
                  + b3_ref[...])

    o_ref[...] = h3.astype(o_ref.dtype)


@functools.partial(jax.jit, static_argnames=("tile_b", "compute_dtype"))
def bit_forward(x, params, *, tile_b=2048, compute_dtype=jnp.bfloat16):
    """Fused 3-layer sigmoid MLP as a single batch-tiled Pallas kernel."""
    w1, b1, w2, b2, w3, b3 = params
    B = x.shape[0]
    K1, N1 = w1.shape            # 199, 200
    N2 = w2.shape[1]             # 100
    N3 = w3.shape[1]             # 64

    # Lane-pad hidden widths to 128 multiples (weights/biases only; x keeps
    # its native 199-wide last dim == full array dim, which is legal).  The
    # final layer keeps its true 64-wide output so the kernel writes the real
    # output shape and no post-kernel slice is needed.
    N1p, N2p = (_round_up(n, 128) for n in (N1, N2))

    def pad2(a, rows, cols, dtype):
        a = a.reshape((-1, a.shape[-1]))
        return jnp.pad(a, ((0, rows - a.shape[0]),
                           (0, cols - a.shape[1]))).astype(dtype)

    w1p = pad2(w1, K1, N1p, compute_dtype)
    w2p = pad2(w2, N1p, N2p, compute_dtype)
    w3p = pad2(w3, N2p, N3, compute_dtype)      # rows padded only
    b1p = pad2(b1, 1, N1p, jnp.float32)
    b2p = pad2(b2, 1, N2p, jnp.float32)
    b3p = pad2(b3, 1, N3, jnp.float32)          # unpadded

    # Batch tile: never larger than needed, multiple of 8, and capped at
    # ceil(B/2) (rounded up to 8) so the grid has >= 2 steps whenever B > 8
    # -> both v7x TensorCores get work and DMA/compute overlap has slack.
    tile_b = _round_up(max(int(tile_b), 8), 8)
    tile_b = min(tile_b, _round_up(max(-(-B // 2), 1), 8))
    grid = (pl.cdiv(B, tile_b),)

    # Advisory cost estimate so XLA can overlap this kernel with neighbors.
    flops = 2 * B * (K1 * N1 + N1 * N2 + N2 * N3)
    transcendentals = B * (N1 + N2 + N3)                     # sigmoids (tanh)
    bytes_accessed = (x.size * x.dtype.itemsize
                      + B * N3 * 4
                      + sum(int(a.size) * a.dtype.itemsize
                            for a in (w1p, b1p, w2p, b2p, w3p, b3p)))

    # Weights/biases use constant index_maps -> stay resident in VMEM.
    resident = lambda a: pl.BlockSpec(a.shape, lambda i: (0,) * a.ndim)

    out = pl.pallas_call(
        _mlp_kernel,
        out_shape=jax.ShapeDtypeStruct((B, N3), jnp.float32),
        grid=grid,
        in_specs=[
            pl.BlockSpec((tile_b, K1), lambda i: (i, 0)),     # x tile
            resident(w1p), resident(b1p),
            resident(w2p), resident(b2p),
            resident(w3p), resident(b3p),
        ],
        out_specs=pl.BlockSpec((tile_b, N3), lambda i: (i, 0)),
        compiler_params=pltpu.CompilerParams(
            dimension_semantics=("parallel",)),
        cost_estimate=pl.CostEstimate(
            flops=flops,
            transcendentals=transcendentals,
            bytes_accessed=bytes_accessed),
    )(x, w1p, b1p, w2p, b2p, w3p, b3p)

    return out


def init_params(key):
    """Deterministic init mimicking PyTorch nn.Linear default
    (uniform(-1/sqrt(fan_in), 1/sqrt(fan_in)) for both weight and bias)."""
    dims = [(199, 200), (200, 100), (100, 64)]
    params = []
    for (fan_in, fan_out) in dims:
        key, kw, kb = jax.random.split(key, 3)
        bound = 1.0 / jnp.sqrt(jnp.float32(fan_in))
        w = jax.random.uniform(kw, (fan_in, fan_out), jnp.float32, -bound, bound)
        b = jax.random.uniform(kb, (1, fan_out), jnp.float32, -bound, bound)
        params.extend([w, b])
    return tuple(params)


def bit_reference(x, params):
    """Pure-JAX reference for correctness checking."""
    w1, b1, w2, b2, w3, b3 = params
    h1 = jax.nn.sigmoid(x @ w1 + b1)
    h2 = jax.nn.sigmoid(h1 @ w2 + b2)
    h3 = jax.nn.sigmoid(h2 @ w3 + b3)
    return h3


if __name__ == "__main__":
    key = jax.random.PRNGKey(0)
    key, kx1, kx2 = jax.random.split(key, 3)
    params = init_params(key)

    # --- small batch, single grid step -------------------------------------
    batch = 8
    x = jax.random.normal(kx1, (batch, 199), dtype=jnp.float32)
    ref = bit_reference(x, params)

    # strict f32 path
    out_f32 = jax.block_until_ready(
        bit_forward(x, params, compute_dtype=jnp.float32))
    assert out_f32.shape == (batch, 64), out_f32.shape
    assert jnp.allclose(out_f32, ref, atol=1e-4, rtol=1e-4), \
        float(jnp.max(jnp.abs(out_f32 - ref)))

    # default bf16-operand path (f32 accumulate); sigmoid outputs are in (0,1)
    out_bf16 = jax.block_until_ready(bit_forward(x, params))
    assert out_bf16.shape == (batch, 64), out_bf16.shape
    assert jnp.allclose(out_bf16, ref, atol=2.5e-2), \
        float(jnp.max(jnp.abs(out_bf16 - ref)))

    # --- multi-step grid over the batch ------------------------------------
    batch2 = 48
    x2 = jax.random.normal(kx2, (batch2, 199), dtype=jnp.float32)
    ref2 = bit_reference(x2, params)
    out2 = jax.block_until_ready(bit_forward(x2, params, tile_b=16))
    assert out2.shape == (batch2, 64), out2.shape
    assert jnp.allclose(out2, ref2, atol=2.5e-2), \
        float(jnp.max(jnp.abs(out2 - ref2)))

    print("KERNEL_OK")
</pallas_src>

<mosaic_0001>
module attributes {stable_mosaic.version = 11 : i64} {
  func.func @_mlp_kernel(%arg0: i32, %arg1: memref<8x199xf32, #tpu.memory_space<vmem>>, %arg2: memref<199x256xf32, #tpu.memory_space<vmem>>, %arg3: memref<1x256xf32, #tpu.memory_space<vmem>>, %arg4: memref<256x128xf32, #tpu.memory_space<vmem>>, %arg5: memref<1x128xf32, #tpu.memory_space<vmem>>, %arg6: memref<128x64xf32, #tpu.memory_space<vmem>>, %arg7: memref<1x64xf32, #tpu.memory_space<vmem>>, %arg8: memref<8x64xf32, #tpu.memory_space<vmem>>) attributes {dimension_semantics = [#tpu.dimension_semantics<parallel>], iteration_bounds = array<i64: 1>, scalar_prefetch = 0 : i64, scratch_operands = 0 : i64, tpu.core_type = #tpu.core_type<tc>, window_params = [{transform_indices = @transform_0, window_bounds = array<i64: 8, 199>}, {pipeline_mode = #tpu.pipeline_mode<synchronous>, transform_indices = @transform_1, window_bounds = array<i64: 199, 256>}, {pipeline_mode = #tpu.pipeline_mode<synchronous>, transform_indices = @transform_2, window_bounds = array<i64: 1, 256>}, {pipeline_mode = #tpu.pipeline_mode<synchronous>, transform_indices = @transform_3, window_bounds = array<i64: 256, 128>}, {pipeline_mode = #tpu.pipeline_mode<synchronous>, transform_indices = @transform_4, window_bounds = array<i64: 1, 128>}, {pipeline_mode = #tpu.pipeline_mode<synchronous>, transform_indices = @transform_5, window_bounds = array<i64: 128, 64>}, {pipeline_mode = #tpu.pipeline_mode<synchronous>, transform_indices = @transform_6, window_bounds = array<i64: 1, 64>}, {transform_indices = @transform_7, window_bounds = array<i64: 8, 64>}]} {
    %c0 = arith.constant 0 : index
    %c0_0 = arith.constant 0 : index
    %0 = vector.load %arg1[%c0, %c0_0] : memref<8x199xf32, #tpu.memory_space<vmem>>, vector<8x199xf32>
    %c0_1 = arith.constant 0 : index
    %c0_2 = arith.constant 0 : index
    %1 = vector.load %arg2[%c0_1, %c0_2] : memref<199x256xf32, #tpu.memory_space<vmem>>, vector<199x256xf32>
    %cst = arith.constant dense<0.000000e+00> : vector<8x256xf32>
    %2 = tpu.matmul %0, %1, %cst {dimension_numbers = #tpu.dot_dimension_numbers<[1], [0], [0], [1], [0, 0, 1, 1], [], []>} : vector<8x199xf32>, vector<199x256xf32>, vector<8x256xf32> -> vector<8x256xf32>
    %c0_3 = arith.constant 0 : index
    %c0_4 = arith.constant 0 : index
    %3 = vector.load %arg3[%c0_3, %c0_4] : memref<1x256xf32, #tpu.memory_space<vmem>>, vector<1x256xf32>
    %4 = vector.broadcast %3 : vector<1x256xf32> to vector<8x256xf32>
    %5 = arith.addf %2, %4 : vector<8x256xf32>
    %cst_5 = arith.constant 5.000000e-01 : f32
    %6 = vector.broadcast %cst_5 : f32 to vector<8x256xf32>
    %7 = arith.mulf %6, %5 : vector<8x256xf32>
    %8 = math.tanh %7 : vector<8x256xf32>
    %cst_6 = arith.constant 5.000000e-01 : f32
    %9 = vector.broadcast %cst_6 : f32 to vector<8x256xf32>
    %10 = arith.mulf %9, %8 : vector<8x256xf32>
    %cst_7 = arith.constant 5.000000e-01 : f32
    %11 = vector.broadcast %cst_7 : f32 to vector<8x256xf32>
    %12 = arith.addf %10, %11 : vector<8x256xf32>
    %c0_8 = arith.constant 0 : index
    %c0_9 = arith.constant 0 : index
    %13 = vector.load %arg4[%c0_8, %c0_9] : memref<256x128xf32, #tpu.memory_space<vmem>>, vector<256x128xf32>
    %cst_10 = arith.constant dense<0.000000e+00> : vector<8x128xf32>
    %14 = tpu.matmul %12, %13, %cst_10 {dimension_numbers = #tpu.dot_dimension_numbers<[1], [0], [0], [1], [0, 0, 1, 1], [], []>} : vector<8x256xf32>, vector<256x128xf32>, vector<8x128xf32> -> vector<8x128xf32>
    %c0_11 = arith.constant 0 : index
    %c0_12 = arith.constant 0 : index
    %15 = vector.load %arg5[%c0_11, %c0_12] : memref<1x128xf32, #tpu.memory_space<vmem>>, vector<1x128xf32>
    %16 = vector.broadcast %15 : vector<1x128xf32> to vector<8x128xf32>
    %17 = arith.addf %14, %16 : vector<8x128xf32>
    %cst_13 = arith.constant 5.000000e-01 : f32
    %18 = vector.broadcast %cst_13 : f32 to vector<8x128xf32>
    %19 = arith.mulf %18, %17 : vector<8x128xf32>
    %20 = math.tanh %19 : vector<8x128xf32>
    %cst_14 = arith.constant 5.000000e-01 : f32
    %21 = vector.broadcast %cst_14 : f32 to vector<8x128xf32>
    %22 = arith.mulf %21, %20 : vector<8x128xf32>
    %cst_15 = arith.constant 5.000000e-01 : f32
    %23 = vector.broadcast %cst_15 : f32 to vector<8x128xf32>
    %24 = arith.addf %22, %23 : vector<8x128xf32>
    %c0_16 = arith.constant 0 : index
    %c0_17 = arith.constant 0 : index
    %25 = vector.load %arg6[%c0_16, %c0_17] : memref<128x64xf32, #tpu.memory_space<vmem>>, vector<128x64xf32>
    %cst_18 = arith.constant dense<0.000000e+00> : vector<8x64xf32>
    %26 = tpu.matmul %24, %25, %cst_18 {dimension_numbers = #tpu.dot_dimension_numbers<[1], [0], [0], [1], [0, 0, 1, 1], [], []>} : vector<8x128xf32>, vector<128x64xf32>, vector<8x64xf32> -> vector<8x64xf32>
    %c0_19 = arith.constant 0 : index
    %c0_20 = arith.constant 0 : index
    %27 = vector.load %arg7[%c0_19, %c0_20] : memref<1x64xf32, #tpu.memory_space<vmem>>, vector<1x64xf32>
    %28 = vector.broadcast %27 : vector<1x64xf32> to vector<8x64xf32>
    %29 = arith.addf %26, %28 : vector<8x64xf32>
    %cst_21 = arith.constant 5.000000e-01 : f32
    %30 = vector.broadcast %cst_21 : f32 to vector<8x64xf32>
    %31 = arith.mulf %30, %29 : vector<8x64xf32>
    %32 = math.tanh %31 : vector<8x64xf32>
    %cst_22 = arith.constant 5.000000e-01 : f32
    %33 = vector.broadcast %cst_22 : f32 to vector<8x64xf32>
    %34 = arith.mulf %33, %32 : vector<8x64xf32>
    %cst_23 = arith.constant 5.000000e-01 : f32
    %35 = vector.broadcast %cst_23 : f32 to vector<8x64xf32>
    %36 = arith.addf %34, %35 : vector<8x64xf32>
    %c0_24 = arith.constant 0 : index
    %c0_25 = arith.constant 0 : index
    %37 = vector.load %arg8[%c0_24, %c0_25] : memref<8x64xf32, #tpu.memory_space<vmem>>, vector<8x64xf32>
    tpu.vector_store %arg8[%c0_24, %c0_25], %36 {strides = array<i32>} : memref<8x64xf32, #tpu.memory_space<vmem>>, vector<8x64xf32>,
    return
  }
  func.func @transform_0(%arg0: i32) -> (i32, i32) {
    %c0_i32 = arith.constant 0 : i32
    %c0_i32_0 = arith.constant 0 : i32
    return %arg0, %c0_i32 : i32, i32
  }
  func.func @transform_1(%arg0: i32) -> (i32, i32) {
    %c0_i32 = arith.constant 0 : i32
    %c0_i32_0 = arith.constant 0 : i32
    %c0_i32_1 = arith.constant 0 : i32
    return %c0_i32, %c0_i32_0 : i32, i32
  }
  func.func @transform_2(%arg0: i32) -> (i32, i32) {
    %c0_i32 = arith.constant 0 : i32
    %c0_i32_0 = arith.constant 0 : i32
    %c0_i32_1 = arith.constant 0 : i32
    return %c0_i32, %c0_i32_0 : i32, i32
  }
  func.func @transform_3(%arg0: i32) -> (i32, i32) {
    %c0_i32 = arith.constant 0 : i32
    %c0_i32_0 = arith.constant 0 : i32
    %c0_i32_1 = arith.constant 0 : i32
    return %c0_i32, %c0_i32_0 : i32, i32
  }
  func.func @transform_4(%arg0: i32) -> (i32, i32) {
    %c0_i32 = arith.constant 0 : i32
    %c0_i32_0 = arith.constant 0 : i32
    %c0_i32_1 = arith.constant 0 : i32
    return %c0_i32, %c0_i32_0 : i32, i32
  }
  func.func @transform_5(%arg0: i32) -> (i32, i32) {
    %c0_i32 = arith.constant 0 : i32
    %c0_i32_0 = arith.constant 0 : i32
    %c0_i32_1 = arith.constant 0 : i32
    return %c0_i32, %c0_i32_0 : i32, i32
  }
  func.func @transform_6(%arg0: i32) -> (i32, i32) {
    %c0_i32 = arith.constant 0 : i32
    %c0_i32_0 = arith.constant 0 : i32
    %c0_i32_1 = arith.constant 0 : i32
    return %c0_i32, %c0_i32_0 : i32, i32
  }
  func.func @transform_7(%arg0: i32) -> (i32, i32) {
    %c0_i32 = arith.constant 0 : i32
    %c0_i32_0 = arith.constant 0 : i32
    return %arg0, %c0_i32 : i32, i32
  }
}

</mosaic_0001>

<llo_original>
// kernel: bit_forward.1
$region0: #{bit_forward.1}
  #allocation0 [shape = 'u32[]', space=smem, size = 0x4, offset = 0x4, fixed_abs, tag = 'smem constant byte address 0x4 - core index']
  #allocation1 [shape = 'u32[144,128]{1,0:T(1,128)}', space=vmem, size = 0x12000, scoped, tag = 'internal scratch']
  %s0 = inlined_call_operand.vmem [shape: f32[8,199], index: 0, kind: input, shape index: {}]
  %s1 = inlined_call_operand.vmem [shape: f32[199,256], index: 1, kind: input, shape index: {}]
  %s2 = inlined_call_operand.vmem [shape: f32[1,256], index: 2, kind: input, shape index: {}]
  %s3 = inlined_call_operand.vmem [shape: f32[256,128], index: 3, kind: input, shape index: {}]
  %s4 = inlined_call_operand.vmem [shape: f32[1,128], index: 4, kind: input, shape index: {}]
  %s5 = inlined_call_operand.vmem [shape: f32[128,64], index: 5, kind: input, shape index: {}]
  %s6 = inlined_call_operand.vmem [shape: f32[1,64], index: 6, kind: input, shape index: {}]
  %s7 = inlined_call_operand.hbm [shape: f32[8,64], index: 7, kind: output, shape index: {}]
  %s8 = sld [smem:[#allocation0]]
  $region38: #{bit_forward.1} parent=0
    _
  %s10 = ssub.s32 1, %s8
  %s11 = scalar_select 0, %s10, %s8
  $region1: #{bit_forward.1} parent=0
    #allocation2 [shape = 'u8[4096]{0}', space=vmem, size = 0x1000, scoped, tag = 'output window, operand 0, single buffered']
    #allocation3 [shape = 's32[1]{0}', space=sflag, size = 0x4, scoped, tag = 'scoped memory for bit_forward.1']
    %12 = vsyncpa [#allocation3], 0
    // Predicated region
    $region2: #{bit_forward.1} parent=1 // pred_check
      _
    $region3: #{bit_forward.1} parent=1 // pred_check_branch
      %14 = sbr.rel (0) target = $region5
    $region4: #{bit_forward.1} parent=1 // pred_region
      _
    $region5: #{bit_forward.1} parent=1 // pred_fallthru
      _
    // Predicated region
    $region6: #{bit_forward.1} parent=1 // pred_check
      _
    $region7: #{bit_forward.1} parent=1 // pred_check_branch
      %16 = sbr.rel (0) target = $region9
    $region8: #{bit_forward.1} parent=1 // pred_region
      _
    $region9: #{bit_forward.1} parent=1 // pred_fallthru
      _
    // Predicated region
    $region10: #{bit_forward.1} parent=1 // pred_check
      _
    $region11: #{bit_forward.1} parent=1 // pred_check_branch
      %18 = sbr.rel (0) target = $region13
    $region12: #{bit_forward.1} parent=1 // pred_region
      _
    $region13: #{bit_forward.1} parent=1 // pred_fallthru
      _
    // Predicated region
    $region14: #{bit_forward.1} parent=1 // pred_check
      _
    $region15: #{bit_forward.1} parent=1 // pred_check_branch
      %20 = sbr.rel (0) target = $region17
    $region16: #{bit_forward.1} parent=1 // pred_region
      _
    $region17: #{bit_forward.1} parent=1 // pred_fallthru
      _
    // Predicated region
    $region18: #{bit_forward.1} parent=1 // pred_check
      _
    $region19: #{bit_forward.1} parent=1 // pred_check_branch
      %22 = sbr.rel (0) target = $region21
    $region20: #{bit_forward.1} parent=1 // pred_region
      _
    $region21: #{bit_forward.1} parent=1 // pred_fallthru
      _
    // Predicated region
    $region22: #{bit_forward.1} parent=1 // pred_check
      _
    $region23: #{bit_forward.1} parent=1 // pred_check_branch
      %24 = sbr.rel (0) target = $region25
    $region24: #{bit_forward.1} parent=1 // pred_region
      _
    $region25: #{bit_forward.1} parent=1 // pred_fallthru
      _
    // Predicated region
    $region26: #{bit_forward.1} parent=1 // pred_check
      _
    $region27: #{bit_forward.1} parent=1 // pred_check_branch
      %26 = sbr.rel (0) target = $region29
    $region28: #{bit_forward.1} parent=1 // pred_region
      _
    $region29: #{bit_forward.1} parent=1 // pred_fallthru
      _
    %v27 = vld [vmem:[%s0] sm:$0xff]
    %v28 = vld [vmem:[%s0 + $0x8] sm:$0xff]
    %v29 = vld [vmem:[%s1] sm:$0xff]
    %v30 = vld [vmem:[%s1 + $0x8] sm:$0xff]
    %v31 = vld [vmem:[%s1 + $0x10] sm:$0xff]
    %v32 = vld [vmem:[%s1 + $0x18] sm:$0xff]
    %v33 = vld [vmem:[%s1 + $0x20] sm:$0xff]
    %v34 = vld [vmem:[%s1 + $0x28] sm:$0xff]
    %v35 = vld [vmem:[%s1 + $0x30] sm:$0xff]
    %v36 = vld [vmem:[%s1 + $0x38] sm:$0xff]
    %v37 = vld [vmem:[%s1 + $0x40] sm:$0xff]
    %v38 = vld [vmem:[%s1 + $0x48] sm:$0xff]
    %v39 = vld [vmem:[%s1 + $0x50] sm:$0xff]
    %v40 = vld [vmem:[%s1 + $0x58] sm:$0xff]
    %v41 = vld [vmem:[%s1 + $0x60] sm:$0xff]
    %v42 = vld [vmem:[%s1 + $0x68] sm:$0xff]
    %v43 = vld [vmem:[%s1 + $0x70] sm:$0xff]
    %v44 = vld [vmem:[%s1 + $0x78] sm:$0xff]
    %v45 = vld [vmem:[%s1 + $0x80] sm:$0xff]
    %v46 = vld [vmem:[%s1 + $0x88] sm:$0xff]
    %v47 = vld [vmem:[%s1 + $0x90] sm:$0xff]
    %v48 = vld [vmem:[%s1 + $0x98] sm:$0xff]
    %v49 = vld [vmem:[%s1 + $0xa0] sm:$0xff]
    %v50 = vld [vmem:[%s1 + $0xa8] sm:$0xff]
    %v51 = vld [vmem:[%s1 + $0xb0] sm:$0xff]
    %v52 = vld [vmem:[%s1 + $0xb8] sm:$0xff]
    %v53 = vld [vmem:[%s1 + $0xc0] sm:$0xff]
    %v54 = vld [vmem:[%s1 + $0xc8] sm:$0xff]
    %v55 = vld [vmem:[%s1 + $0xd0] sm:$0xff]
    %v56 = vld [vmem:[%s1 + $0xd8] sm:$0xff]
    %v57 = vld [vmem:[%s1 + $0xe0] sm:$0xff]
    %v58 = vld [vmem:[%s1 + $0xe8] sm:$0xff]
    %v59 = vld [vmem:[%s1 + $0xf0] sm:$0xff]
    %v60 = vld [vmem:[%s1 + $0xf8] sm:$0xff]
    %v61 = vld [vmem:[%s1 + $0x100] sm:$0xff]
    %v62 = vld [vmem:[%s1 + $0x108] sm:$0xff]
    %v63 = vld [vmem:[%s1 + $0x110] sm:$0xff]
    %v64 = vld [vmem:[%s1 + $0x118] sm:$0xff]
    %v65 = vld [vmem:[%s1 + $0x120] sm:$0xff]
    %v66 = vld [vmem:[%s1 + $0x128] sm:$0xff]
    %v67 = vld [vmem:[%s1 + $0x130] sm:$0xff]
    %v68 = vld [vmem:[%s1 + $0x138] sm:$0xff]
    %v69 = vld [vmem:[%s1 + $0x140] sm:$0xff]
    %v70 = vld [vmem:[%s1 + $0x148] sm:$0xff]
    %v71 = vld [vmem:[%s1 + $0x150] sm:$0xff]
    %v72 = vld [vmem:[%s1 + $0x158] sm:$0xff]
    %v73 = vld [vmem:[%s1 + $0x160] sm:$0xff]
    %v74 = vld [vmem:[%s1 + $0x168] sm:$0xff]
    %v75 = vld [vmem:[%s1 + $0x170] sm:$0xff]
    %v76 = vld [vmem:[%s1 + $0x178] sm:$0xff]
    %v77 = vld [vmem:[%s1 + $0x180] sm:$0x7f]
    %v78 = vld [vmem:[%s1 + $0x188] sm:$0x7f]
    %v79 = vld [vmem:[%s2] sm:$0x3]
    %v81 = vlaneseq
    %v82 = vshrl.u32 %v81, 7
    %v83 = vsub.s32 0, %v82
    %v84 = vrot.slane %v79, %v83
    %v85 = vlaneseq
    %v86 = vshrl.u32 %v85, 7
    %v87 = vsub.s32 1, %v86
    %v88 = vrot.slane %v79, %v87
    %vm91 = vcmask 580608
    %v93 = vsel %vm91, %v28, 0
    %vm95 = vcmask 1046528
    %v97 = vsel %vm95, %v77, 0
    %v100 = vsel %vm95, %v78, 0
    %102 = vmatprep.subr.mxu0 %v60
    %103 = vmatpush1.msra.mxu0 %v59
    %104 = vmatprep.subr.mxu0 %v58
    %105 = vmatpush1.msra.mxu0 %v57
    %106 = vmatprep.subr.mxu0 %v56
    %107 = vmatpush1.msra.mxu0 %v55
    %108 = vmatprep.subr.mxu0 %v54
    %109 = vmatpush1.msra.mxu0 %v53
    %110 = vmatprep.subr.mxu0 %v52
    %111 = vmatpush1.msra.mxu0 %v51
    %112 = vmatprep.subr.mxu0 %v50
    %113 = vmatpush1.msra.mxu0 %v49
    %114 = vmatprep.subr.mxu0 %v48
    %115 = vmatpush1.msra.mxu0 %v47
    %116 = vmatprep.subr.mxu0 %v46
    %117 = vmatpush1.msra.mxu0 %v45
    %118 = vmatprep.subr.mxu0 %v44
    %119 = vmatpush1.msra.mxu0 %v43
    %120 = vmatprep.subr.mxu0 %v42
    %121 = vmatpush1.msra.mxu0 %v41
    %122 = vmatprep.subr.mxu0 %v40
    %123 = vmatpush1.msra.mxu0 %v39
    %124 = vmatprep.subr.mxu0 %v38
    %125 = vmatpush1.msra.mxu0 %v37
    %126 = vmatprep.subr.mxu0 %v36
    %127 = vmatpush1.msra.mxu0 %v35
    %128 = vmatprep.subr.mxu0 %v34
    %129 = vmatpush1.msra.mxu0 %v33
    %130 = vmatprep.subr.mxu0 %v32
    %131 = vmatpush1.msra.mxu0 %v31
    %132 = vmatprep.subr.mxu0 %v30
    %133 = vmatpush1.msra.mxu0 %v29
    %134 = vmatprep.subr.mxu0 0.0
    %135 = vmatpush2.msra.mxu0 0.0
    %136 = vmatprep.subr.mxu0 0.0
    %137 = vmatpush2.msra.mxu0 0.0
    %138 = vmatprep.subr.mxu0 0.0
    %139 = vmatpush2.msra.mxu0 0.0
    %140 = vmatprep.subr.mxu0 0.0
    %141 = vmatpush2.msra.mxu0 0.0
    %142 = vmatprep.subr.mxu0 0.0
    %143 = vmatpush2.msra.mxu0 0.0
    %144 = vmatprep.subr.mxu0 0.0
    %145 = vmatpush2.msra.mxu0 0.0
    %146 = vmatprep.subr.mxu0 0.0
    %147 = vmatpush2.msra.mxu0 0.0
    %148 = vmatprep.subr.mxu0 %v100
    %149 = vmatpush2.msra.mxu0 %v97
    %150 = vmatprep.subr.mxu0 %v76
    %151 = vmatpush2.msra.mxu0 %v75
    %152 = vmatprep.subr.mxu0 %v74
    %153 = vmatpush2.msra.mxu0 %v73
    %154 = vmatprep.subr.mxu0 %v72
    %155 = vmatpush2.msra.mxu0 %v71
    %156 = vmatprep.subr.mxu0 %v70
    %157 = vmatpush2.msra.mxu0 %v69
    %158 = vmatprep.subr.mxu0 %v68
    %159 = vmatpush2.msra.mxu0 %v67
    %160 = vmatprep.subr.mxu0 %v66
    %161 = vmatpush2.msra.mxu0 %v65
    %162 = vmatprep.subr.mxu0 %v64
    %163 = vmatpush2.msra.mxu0 %v63
    %164 = vmatprep.subr.mxu0 %v62
    %165 = vmatpush2.msra.mxu0 %v61
    %166 = vmatprep.mubr.f32.mxu0 %v93
    %167 = vmatmul.mubr.f32.gmra.mxu0 %v27
    %v168 = vpop.f32.mrf.mxu0
    %v169 = vadd.f32 %v84, %v168
    %v170 = vpop.f32.mrf.mxu0
    %v171 = vadd.f32 %v88, %v170
    %172 = vdwg.mxu0
    %v173 = vmul.f32 %v169, 0.5
    %v174 = vmul.f32 %v171, 0.5
    %v175 = vtanh.pop %v173
    %v176 = vtanh.pop %v174
    %v177 = vmul.f32 %v175, 0.5
    %v178 = vmul.f32 %v176, 0.5
    %v179 = vadd.f32 %v177, 0.5
    %v180 = vadd.f32 %v178, 0.5
    %v181 = vld [vmem:[%s3] sm:$0xff]
    %v182 = vld [vmem:[%s3 + $0x8] sm:$0xff]
    %v183 = vld [vmem:[%s3 + $0x10] sm:$0xff]
    %v184 = vld [vmem:[%s3 + $0x18] sm:$0xff]
    %v185 = vld [vmem:[%s3 + $0x20] sm:$0xff]
    %v186 = vld [vmem:[%s3 + $0x28] sm:$0xff]
    %v187 = vld [vmem:[%s3 + $0x30] sm:$0xff]
    %v188 = vld [vmem:[%s3 + $0x38] sm:$0xff]
    %v189 = vld [vmem:[%s3 + $0x40] sm:$0xff]
    %v190 = vld [vmem:[%s3 + $0x48] sm:$0xff]
    %v191 = vld [vmem:[%s3 + $0x50] sm:$0xff]
    %v192 = vld [vmem:[%s3 + $0x58] sm:$0xff]
    %v193 = vld [vmem:[%s3 + $0x60] sm:$0xff]
    %v194 = vld [vmem:[%s3 + $0x68] sm:$0xff]
    %v195 = vld [vmem:[%s3 + $0x70] sm:$0xff]
    %v196 = vld [vmem:[%s3 + $0x78] sm:$0xff]
    %v197 = vld [vmem:[%s3 + $0x80] sm:$0xff]
    %v198 = vld [vmem:[%s3 + $0x88] sm:$0xff]
    %v199 = vld [vmem:[%s3 + $0x90] sm:$0xff]
    %v200 = vld [vmem:[%s3 + $0x98] sm:$0xff]
    %v201 = vld [vmem:[%s3 + $0xa0] sm:$0xff]
    %v202 = vld [vmem:[%s3 + $0xa8] sm:$0xff]
    %v203 = vld [vmem:[%s3 + $0xb0] sm:$0xff]
    %v204 = vld [vmem:[%s3 + $0xb8] sm:$0xff]
    %v205 = vld [vmem:[%s3 + $0xc0] sm:$0xff]
    %v206 = vld [vmem:[%s3 + $0xc8] sm:$0xff]
    %v207 = vld [vmem:[%s3 + $0xd0] sm:$0xff]
    %v208 = vld [vmem:[%s3 + $0xd8] sm:$0xff]
    %v209 = vld [vmem:[%s3 + $0xe0] sm:$0xff]
    %v210 = vld [vmem:[%s3 + $0xe8] sm:$0xff]
    %v211 = vld [vmem:[%s3 + $0xf0] sm:$0xff]
    %v212 = vld [vmem:[%s3 + $0xf8] sm:$0xff]
    %v213 = vld [vmem:[%s4] sm:$0x1]
    %v215 = vlaneseq
    %v216 = vshrl.u32 %v215, 7
    %v217 = vsub.s32 0, %v216
    %v218 = vrot.slane %v213, %v217
    %220 = vmatprep.subr.mxu0 0.0
    %221 = vmatpush1.msra.mxu0 %v196
    %222 = vmatprep.subr.mxu0 0.0
    %223 = vmatpush1.msra.mxu0 %v195
    %224 = vmatprep.subr.mxu0 0.0
    %225 = vmatpush1.msra.mxu0 %v194
    %226 = vmatprep.subr.mxu0 0.0
    %227 = vmatpush1.msra.mxu0 %v193
    %228 = vmatprep.subr.mxu0 0.0
    %229 = vmatpush1.msra.mxu0 %v192
    %230 = vmatprep.subr.mxu0 0.0
    %231 = vmatpush1.msra.mxu0 %v191
    %232 = vmatprep.subr.mxu0 0.0
    %233 = vmatpush1.msra.mxu0 %v190
    %234 = vmatprep.subr.mxu0 0.0
    %235 = vmatpush1.msra.mxu0 %v189
    %236 = vmatprep.subr.mxu0 0.0
    %237 = vmatpush1.msra.mxu0 %v188
    %238 = vmatprep.subr.mxu0 0.0
    %239 = vmatpush1.msra.mxu0 %v187
    %240 = vmatprep.subr.mxu0 0.0
    %241 = vmatpush1.msra.mxu0 %v186
    %242 = vmatprep.subr.mxu0 0.0
    %243 = vmatpush1.msra.mxu0 %v185
    %244 = vmatprep.subr.mxu0 0.0
    %245 = vmatpush1.msra.mxu0 %v184
    %246 = vmatprep.subr.mxu0 0.0
    %247 = vmatpush1.msra.mxu0 %v183
    %248 = vmatprep.subr.mxu0 0.0
    %249 = vmatpush1.msra.mxu0 %v182
    %250 = vmatprep.subr.mxu0 0.0
    %251 = vmatpush1.msra.mxu0 %v181
    %252 = vmatprep.subr.mxu0 0.0
    %253 = vmatpush2.msra.mxu0 %v212
    %254 = vmatprep.subr.mxu0 0.0
    %255 = vmatpush2.msra.mxu0 %v211
    %256 = vmatprep.subr.mxu0 0.0
    %257 = vmatpush2.msra.mxu0 %v210
    %258 = vmatprep.subr.mxu0 0.0
    %259 = vmatpush2.msra.mxu0 %v209
    %260 = vmatprep.subr.mxu0 0.0
    %261 = vmatpush2.msra.mxu0 %v208
    %262 = vmatprep.subr.mxu0 0.0
    %263 = vmatpush2.msra.mxu0 %v207
    %264 = vmatprep.subr.mxu0 0.0
    %265 = vmatpush2.msra.mxu0 %v206
    %266 = vmatprep.subr.mxu0 0.0
    %267 = vmatpush2.msra.mxu0 %v205
    %268 = vmatprep.subr.mxu0 0.0
    %269 = vmatpush2.msra.mxu0 %v204
    %270 = vmatprep.subr.mxu0 0.0
    %271 = vmatpush2.msra.mxu0 %v203
    %272 = vmatprep.subr.mxu0 0.0
    %273 = vmatpush2.msra.mxu0 %v202
    %274 = vmatprep.subr.mxu0 0.0
    %275 = vmatpush2.msra.mxu0 %v201
    %276 = vmatprep.subr.mxu0 0.0
    %277 = vmatpush2.msra.mxu0 %v200
    %278 = vmatprep.subr.mxu0 0.0
    %279 = vmatpush2.msra.mxu0 %v199
    %280 = vmatprep.subr.mxu0 0.0
    %281 = vmatpush2.msra.mxu0 %v198
    %282 = vmatprep.subr.mxu0 0.0
    %283 = vmatpush2.msra.mxu0 %v197
    %284 = vmatprep.mubr.f32.mxu0 %v180
    %285 = vmatmul.mubr.f32.gmra.mxu0 %v179
    %v286 = vpop.f32.mrf.mxu0
    %v287 = vadd.f32 %v218, %v286
    %v288 = vpop.f32.mrf.mxu0
    %289 = vdwg.mxu0
    %v290 = vmul.f32 %v287, 0.5
    %v291 = vtanh.pop %v290
    %v292 = vmul.f32 %v291, 0.5
    %v293 = vadd.f32 %v292, 0.5
    %v294 = vld [vmem:[%s5] sm:$0xff]
    %v295 = vld [vmem:[%s5 + $0x8] sm:$0xff]
    %v296 = vld [vmem:[%s5 + $0x10] sm:$0xff]
    %v297 = vld [vmem:[%s5 + $0x18] sm:$0xff]
    %v298 = vld [vmem:[%s5 + $0x20] sm:$0xff]
    %v299 = vld [vmem:[%s5 + $0x28] sm:$0xff]
    %v300 = vld [vmem:[%s5 + $0x30] sm:$0xff]
    %v301 = vld [vmem:[%s5 + $0x38] sm:$0xff]
    %v302 = vld [vmem:[%s5 + $0x40] sm:$0xff]
    %v303 = vld [vmem:[%s5 + $0x48] sm:$0xff]
    %v304 = vld [vmem:[%s5 + $0x50] sm:$0xff]
    %v305 = vld [vmem:[%s5 + $0x58] sm:$0xff]
    %v306 = vld [vmem:[%s5 + $0x60] sm:$0xff]
    %v307 = vld [vmem:[%s5 + $0x68] sm:$0xff]
    %v308 = vld [vmem:[%s5 + $0x70] sm:$0xff]
    %v309 = vld [vmem:[%s5 + $0x78] sm:$0xff]
    %v310 = vld [vmem:[%s6] sm:$0x1]
    %v312 = vlaneseq
    %v313 = vshrl.u32 %v312, 7
    %v314 = vsub.s32 0, %v313
    %v315 = vrot.slane %v310, %v314
    %317 = vmatprep.subr.mxu0 0.0
    %318 = vmatpush1.msra.mxu0 %v309
    %319 = vmatprep.subr.mxu0 0.0
    %320 = vmatpush1.msra.mxu0 %v308
    %321 = vmatprep.subr.mxu0 0.0
    %322 = vmatpush1.msra.mxu0 %v307
    %323 = vmatprep.subr.mxu0 0.0
    %324 = vmatpush1.msra.mxu0 %v306
    %325 = vmatprep.subr.mxu0 0.0
    %326 = vmatpush1.msra.mxu0 %v305
    %327 = vmatprep.subr.mxu0 0.0
    %328 = vmatpush1.msra.mxu0 %v304
    %329 = vmatprep.subr.mxu0 0.0
    %330 = vmatpush1.msra.mxu0 %v303
    %331 = vmatprep.subr.mxu0 0.0
    %332 = vmatpush1.msra.mxu0 %v302
    %333 = vmatprep.subr.mxu0 0.0
    %334 = vmatpush1.msra.mxu0 %v301
    %335 = vmatprep.subr.mxu0 0.0
    %336 = vmatpush1.msra.mxu0 %v300
    %337 = vmatprep.subr.mxu0 0.0
    %338 = vmatpush1.msra.mxu0 %v299
    %339 = vmatprep.subr.mxu0 0.0
    %340 = vmatpush1.msra.mxu0 %v298
    %341 = vmatprep.subr.mxu0 0.0
    %342 = vmatpush1.msra.mxu0 %v297
    %343 = vmatprep.subr.mxu0 0.0
    %344 = vmatpush1.msra.mxu0 %v296
    %345 = vmatprep.subr.mxu0 0.0
    %346 = vmatpush1.msra.mxu0 %v295
    %347 = vmatprep.subr.mxu0 0.0
    %348 = vmatpush1.msra.mxu0 %v294
    %349 = vmatprep.subr.mxu0 0.0
    %350 = vmatpush2.msra.mxu0 0.0
    %351 = vmatprep.subr.mxu0 0.0
    %352 = vmatpush2.msra.mxu0 0.0
    %353 = vmatprep.subr.mxu0 0.0
    %354 = vmatpush2.msra.mxu0 0.0
    %355 = vmatprep.subr.mxu0 0.0
    %356 = vmatpush2.msra.mxu0 0.0
    %357 = vmatprep.subr.mxu0 0.0
    %358 = vmatpush2.msra.mxu0 0.0
    %359 = vmatprep.subr.mxu0 0.0
    %360 = vmatpush2.msra.mxu0 0.0
    %361 = vmatprep.subr.mxu0 0.0
    %362 = vmatpush2.msra.mxu0 0.0
    %363 = vmatprep.subr.mxu0 0.0
    %364 = vmatpush2.msra.mxu0 0.0
    %365 = vmatprep.subr.mxu0 0.0
    %366 = vmatpush2.msra.mxu0 0.0
    %367 = vmatprep.subr.mxu0 0.0
    %368 = vmatpush2.msra.mxu0 0.0
    %369 = vmatprep.subr.mxu0 0.0
    %370 = vmatpush2.msra.mxu0 0.0
    %371 = vmatprep.subr.mxu0 0.0
    %372 = vmatpush2.msra.mxu0 0.0
    %373 = vmatprep.subr.mxu0 0.0
    %374 = vmatpush2.msra.mxu0 0.0
    %375 = vmatprep.subr.mxu0 0.0
    %376 = vmatpush2.msra.mxu0 0.0
    %377 = vmatprep.subr.mxu0 0.0
    %378 = vmatpush2.msra.mxu0 0.0
    %379 = vmatprep.subr.mxu0 0.0
    %380 = vmatpush2.msra.mxu0 0.0
    %381 = vmatprep.mubr.f32.mxu0 0.0
    %382 = vmatmul.mubr.f32.gmra.mxu0 %v293
    %v383 = vpop.f32.mrf.mxu0
    %v384 = vadd.f32 %v315, %v383
    %v385 = vpop.f32.mrf.mxu0
    %386 = vdwg.mxu0
    %v387 = vmul.f32 %v384, 0.5
    %v388 = vtanh.pop %v387
    %v389 = vmul.f32 %v388, 0.5
    %v390 = vadd.f32 %v389, 0.5
    %vm391 = vcmask 523264
    %392 = vst.msk [vmem:[#allocation2] sm:$0xff] %vm391, %v390
    // Predicated region
    $region30: #{bit_forward.1} parent=1 // pred_check
      _
    $region31: #{bit_forward.1} parent=1 // pred_check_branch
      %394 = sbr.rel (0) target = $region33
    $region32: #{bit_forward.1} parent=1 // pred_region
      %s396 = ssub.s32 128, 128
      %397 = vsyncadd [#allocation3], %s396
      %s399 = sshll.u32 [#allocation2], 4
      %s400 = int_to_ptr.vmem [resolvable:$true] %s399
      %402 = dma.vmem_to_hbm [thread:$0]  %s400, 128, %s7, [#allocation3]
    $region33: #{bit_forward.1} parent=1 // pred_fallthru
      _
    // Predicated region
    $region34: #{bit_forward.1} parent=1 // pred_check
      _
    $region35: #{bit_forward.1} parent=1 // pred_check_branch
      %404 = sbr.rel (0) target = $region37
    $region36: #{bit_forward.1} parent=1 // pred_region
      %405 = dma.done [#allocation3], 128
    $region37: #{bit_forward.1} parent=1 // pred_fallthru
      _
    %406 = vsyncpa [#allocation3], 1

</llo_original>
